<compile_context>
chip_gen: v5e
topology: v5e:2x2
jax: 0.10.0
libtpu: 0.0.40
codegen_flags: <defaults>
</compile_context>

<pallas_src>
import jax
import jax.numpy as jnp
from jax.experimental import pallas as pl
from jax.experimental.pallas import tpu as pltpu

B = 2          # batch (fixed by torch.zeros(2, 5) in the module)
I = 4          # input feature dim (ih is 4x5)
H = 5          # hidden dim
OUT_LANES = 128  # lane-dense width for the scalar output


def rnn_kernel(x_ref, ih_ref, hh_ref, b_ref, o_ref, xp_ref):
    """One-shot RNN recurrence + final sum.

    x_ref:  (T*B, I)   all timesteps, flattened to rows (VMEM)
    ih_ref: (I, H)     input projection weight
    hh_ref: (H, H)     recurrent weight
    b_ref:  (1, H)     bias
    o_ref:  (1, 128)   lane-dense output; scalar result broadcast across lanes
    xp_ref: (T*B, H)   VMEM scratch holding the batched input projection
    """
    n_rows = x_ref.shape[0]          # T * B (static)
    n_steps = n_rows // B            # T

    # Batched input projection: one matmul + a single bias broadcast,
    # hoisted off the serial recurrence chain.
    xp_ref[...] = (
        jnp.dot(x_ref[...], ih_ref[...], preferred_element_type=jnp.float32)
        + b_ref[...]
    )

    hh = hh_ref[...]
    h = jnp.zeros((B, H), jnp.float32)

    # Fully (statically) unrolled recurrence: only the dependent h @ hh matmul
    # remains per step. T is tiny and static, so a Python loop gives the LLO
    # scheduler full visibility (equivalent to fori_loop(..., unroll=True)).
    for t in range(n_steps):
        h = xp_ref[pl.ds(t * B, B), :] + jnp.dot(
            h, hh, preferred_element_type=jnp.float32
        )

    # Lane-dense store: broadcast the scalar sum across one (1, 128) row.
    o_ref[...] = jnp.full((1, OUT_LANES), jnp.sum(h), dtype=jnp.float32)


@jax.jit
def rnn_sum(x, ih, hh, bias):
    """x: [T, B, I] f32; returns scalar f32 = sum(h_T) matching the module."""
    T = x.shape[0]
    x2d = x.reshape(T * B, I)        # flatten timesteps into rows
    bias2d = bias.reshape(1, H)

    out = pl.pallas_call(
        rnn_kernel,
        out_shape=jax.ShapeDtypeStruct((1, OUT_LANES), jnp.float32),
        # No grid: a single invocation; every operand is one whole-array VMEM
        # block (total working set well under 1 KiB), so there is zero
        # per-step pipelining / DMA bookkeeping.  Single-core, single-shot.
        scratch_shapes=[pltpu.VMEM((T * B, H), jnp.float32)],
    )(x2d, ih, hh, bias2d)
    return out[0, 0]


def reference(x, ih, hh, bias):
    h = jnp.zeros((B, H), jnp.float32)
    for t in range(x.shape[0]):
        h = x[t] @ ih + h @ hh + bias
    return jnp.sum(h)


if __name__ == "__main__":
    key = jax.random.PRNGKey(0)
    k_x, k_ih, k_hh, k_b = jax.random.split(key, 4)

    T = 8  # sequence length
    x = jax.random.normal(k_x, (T, B, I), dtype=jnp.float32)

    # Deterministic "randn" parameters matching the module's shapes.
    ih = jax.random.normal(k_ih, (I, H), dtype=jnp.float32)
    hh = jax.random.normal(k_hh, (H, H), dtype=jnp.float32)
    bias = jax.random.normal(k_b, (H,), dtype=jnp.float32)

    result = jax.block_until_ready(rnn_sum(x, ih, hh, bias))

    # sanity check against pure-JAX reference
    ref = jax.block_until_ready(reference(x, ih, hh, bias))
    assert jnp.allclose(result, ref, rtol=1e-4, atol=1e-4), (result, ref)

    print("KERNEL_OK")
</pallas_src>

<mosaic_0001>
module attributes {stable_mosaic.version = 11 : i64} {
  func.func @rnn_kernel(%arg0: memref<16x4xf32, #tpu.memory_space<vmem>>, %arg1: memref<4x5xf32, #tpu.memory_space<vmem>>, %arg2: memref<5x5xf32, #tpu.memory_space<vmem>>, %arg3: memref<1x5xf32, #tpu.memory_space<vmem>>, %arg4: memref<1x128xf32, #tpu.memory_space<vmem>>, %arg5: memref<16x5xf32, #tpu.memory_space<vmem>>) attributes {dimension_semantics = [], scalar_prefetch = 0 : i64, scratch_operands = 1 : i64, tpu.core_type = #tpu.core_type<tc>} {
    %c0 = arith.constant 0 : index
    %c0_0 = arith.constant 0 : index
    %0 = vector.load %arg0[%c0, %c0_0] : memref<16x4xf32, #tpu.memory_space<vmem>>, vector<16x4xf32>
    %c0_1 = arith.constant 0 : index
    %c0_2 = arith.constant 0 : index
    %1 = vector.load %arg1[%c0_1, %c0_2] : memref<4x5xf32, #tpu.memory_space<vmem>>, vector<4x5xf32>
    %cst = arith.constant dense<0.000000e+00> : vector<16x5xf32>
    %2 = tpu.matmul %0, %1, %cst {dimension_numbers = #tpu.dot_dimension_numbers<[1], [0], [0], [1], [0, 0, 1, 1], [], []>} : vector<16x4xf32>, vector<4x5xf32>, vector<16x5xf32> -> vector<16x5xf32>
    %c0_3 = arith.constant 0 : index
    %c0_4 = arith.constant 0 : index
    %3 = vector.load %arg3[%c0_3, %c0_4] : memref<1x5xf32, #tpu.memory_space<vmem>>, vector<1x5xf32>
    %4 = vector.broadcast %3 : vector<1x5xf32> to vector<16x5xf32>
    %5 = arith.addf %2, %4 : vector<16x5xf32>
    %c0_5 = arith.constant 0 : index
    %c0_6 = arith.constant 0 : index
    %6 = vector.load %arg5[%c0_5, %c0_6] : memref<16x5xf32, #tpu.memory_space<vmem>>, vector<16x5xf32>
    tpu.vector_store %arg5[%c0_5, %c0_6], %5 {strides = array<i32>} : memref<16x5xf32, #tpu.memory_space<vmem>>, vector<16x5xf32>,
    %c0_7 = arith.constant 0 : index
    %c0_8 = arith.constant 0 : index
    %7 = vector.load %arg2[%c0_7, %c0_8] : memref<5x5xf32, #tpu.memory_space<vmem>>, vector<5x5xf32>
    %cst_9 = arith.constant 0.000000e+00 : f32
    %8 = vector.broadcast %cst_9 : f32 to vector<2x5xf32>
    %c0_10 = arith.constant 0 : index
    %c0_11 = arith.constant 0 : index
    %9 = vector.load %arg5[%c0_10, %c0_11] : memref<16x5xf32, #tpu.memory_space<vmem>>, vector<2x5xf32>
    %cst_12 = arith.constant dense<0.000000e+00> : vector<2x5xf32>
    %10 = tpu.matmul %8, %7, %cst_12 {dimension_numbers = #tpu.dot_dimension_numbers<[1], [0], [0], [1], [0, 0, 1, 1], [], []>} : vector<2x5xf32>, vector<5x5xf32>, vector<2x5xf32> -> vector<2x5xf32>
    %11 = arith.addf %9, %10 : vector<2x5xf32>
    %c2 = arith.constant 2 : index
    %c0_13 = arith.constant 0 : index
    %12 = vector.load %arg5[%c2, %c0_13] : memref<16x5xf32, #tpu.memory_space<vmem>>, vector<2x5xf32>
    %cst_14 = arith.constant dense<0.000000e+00> : vector<2x5xf32>
    %13 = tpu.matmul %11, %7, %cst_14 {dimension_numbers = #tpu.dot_dimension_numbers<[1], [0], [0], [1], [0, 0, 1, 1], [], []>} : vector<2x5xf32>, vector<5x5xf32>, vector<2x5xf32> -> vector<2x5xf32>
    %14 = arith.addf %12, %13 : vector<2x5xf32>
    %c4 = arith.constant 4 : index
    %c0_15 = arith.constant 0 : index
    %15 = vector.load %arg5[%c4, %c0_15] : memref<16x5xf32, #tpu.memory_space<vmem>>, vector<2x5xf32>
    %cst_16 = arith.constant dense<0.000000e+00> : vector<2x5xf32>
    %16 = tpu.matmul %14, %7, %cst_16 {dimension_numbers = #tpu.dot_dimension_numbers<[1], [0], [0], [1], [0, 0, 1, 1], [], []>} : vector<2x5xf32>, vector<5x5xf32>, vector<2x5xf32> -> vector<2x5xf32>
    %17 = arith.addf %15, %16 : vector<2x5xf32>
    %c6 = arith.constant 6 : index
    %c0_17 = arith.constant 0 : index
    %18 = vector.load %arg5[%c6, %c0_17] : memref<16x5xf32, #tpu.memory_space<vmem>>, vector<2x5xf32>
    %cst_18 = arith.constant dense<0.000000e+00> : vector<2x5xf32>
    %19 = tpu.matmul %17, %7, %cst_18 {dimension_numbers = #tpu.dot_dimension_numbers<[1], [0], [0], [1], [0, 0, 1, 1], [], []>} : vector<2x5xf32>, vector<5x5xf32>, vector<2x5xf32> -> vector<2x5xf32>
    %20 = arith.addf %18, %19 : vector<2x5xf32>
    %c8 = arith.constant 8 : index
    %c0_19 = arith.constant 0 : index
    %21 = vector.load %arg5[%c8, %c0_19] : memref<16x5xf32, #tpu.memory_space<vmem>>, vector<2x5xf32>
    %cst_20 = arith.constant dense<0.000000e+00> : vector<2x5xf32>
    %22 = tpu.matmul %20, %7, %cst_20 {dimension_numbers = #tpu.dot_dimension_numbers<[1], [0], [0], [1], [0, 0, 1, 1], [], []>} : vector<2x5xf32>, vector<5x5xf32>, vector<2x5xf32> -> vector<2x5xf32>
    %23 = arith.addf %21, %22 : vector<2x5xf32>
    %c10 = arith.constant 10 : index
    %c0_21 = arith.constant 0 : index
    %24 = vector.load %arg5[%c10, %c0_21] : memref<16x5xf32, #tpu.memory_space<vmem>>, vector<2x5xf32>
    %cst_22 = arith.constant dense<0.000000e+00> : vector<2x5xf32>
    %25 = tpu.matmul %23, %7, %cst_22 {dimension_numbers = #tpu.dot_dimension_numbers<[1], [0], [0], [1], [0, 0, 1, 1], [], []>} : vector<2x5xf32>, vector<5x5xf32>, vector<2x5xf32> -> vector<2x5xf32>
    %26 = arith.addf %24, %25 : vector<2x5xf32>
    %c12 = arith.constant 12 : index
    %c0_23 = arith.constant 0 : index
    %27 = vector.load %arg5[%c12, %c0_23] : memref<16x5xf32, #tpu.memory_space<vmem>>, vector<2x5xf32>
    %cst_24 = arith.constant dense<0.000000e+00> : vector<2x5xf32>
    %28 = tpu.matmul %26, %7, %cst_24 {dimension_numbers = #tpu.dot_dimension_numbers<[1], [0], [0], [1], [0, 0, 1, 1], [], []>} : vector<2x5xf32>, vector<5x5xf32>, vector<2x5xf32> -> vector<2x5xf32>
    %29 = arith.addf %27, %28 : vector<2x5xf32>
    %c14 = arith.constant 14 : index
    %c0_25 = arith.constant 0 : index
    %30 = vector.load %arg5[%c14, %c0_25] : memref<16x5xf32, #tpu.memory_space<vmem>>, vector<2x5xf32>
    %cst_26 = arith.constant dense<0.000000e+00> : vector<2x5xf32>
    %31 = tpu.matmul %29, %7, %cst_26 {dimension_numbers = #tpu.dot_dimension_numbers<[1], [0], [0], [1], [0, 0, 1, 1], [], []>} : vector<2x5xf32>, vector<5x5xf32>, vector<2x5xf32> -> vector<2x5xf32>
    %32 = arith.addf %30, %31 : vector<2x5xf32>
    %33 = vector.shape_cast %32 : vector<2x5xf32> to vector<1x2x5xf32>
    %cst_27 = arith.constant dense<0.000000e+00> : vector<1xf32>
    %34 = vector.multi_reduction <add>, %33, %cst_27 [1, 2] : vector<1x2x5xf32> to vector<1xf32>
    %35 = vector.shape_cast %34 : vector<1xf32> to vector<1x1x1xf32>
    %36 = vector.extract %35[0, 0, 0] : f32 from vector<1x1x1xf32>
    %37 = vector.broadcast %36 : f32 to vector<1x128xf32>
    %c0_28 = arith.constant 0 : index
    %c0_29 = arith.constant 0 : index
    %38 = vector.load %arg4[%c0_28, %c0_29] : memref<1x128xf32, #tpu.memory_space<vmem>>, vector<1x128xf32>
    tpu.vector_store %arg4[%c0_28, %c0_29], %37 {strides = array<i32>} : memref<1x128xf32, #tpu.memory_space<vmem>>, vector<1x128xf32>,
    return
  }
}

</mosaic_0001>

<llo_original>
// kernel: rnn_sum.1
$region0: #{rnn_sum.1}
  #allocation0 [shape = 'u32[]', space=smem, size = 0x4, offset = 0x4, fixed_abs, tag = 'smem constant byte address 0x4 - core index']
  #allocation1 [shape = 'u32[72,128]{1,0:T(1,128)}', space=vmem, size = 0x9000, scoped, tag = 'internal scratch']
  #allocation2 [shape = 'f32[16,5]{1,0:T(8,128)}', space=vmem, size = 0x2000, scoped, tag = 'scratch operand']
  %s0 = inlined_call_operand.vmem [shape: f32[16,4], index: 0, kind: input, shape index: {}]
  %s1 = inlined_call_operand.vmem [shape: f32[4,5], index: 1, kind: input, shape index: {}]
  %s2 = inlined_call_operand.vmem [shape: f32[5,5], index: 2, kind: input, shape index: {}]
  %s3 = inlined_call_operand.vmem [shape: f32[1,5], index: 3, kind: input, shape index: {}]
  %s4 = inlined_call_operand.hbm [shape: f32[1,128], index: 4, kind: output, shape index: {}]
  %s5 = sld [smem:[#allocation0]]
  $region26: #{rnn_sum.1} parent=0
    _
  %s7 = ssub.s32 1, %s5
  %s8 = scalar_select 0, %s7, %s5
  $region1: #{rnn_sum.1} parent=0
    #allocation3 [shape = 'u8[512]{0}', space=vmem, size = 0x400, scoped, tag = 'output window, operand 0, single buffered']
    #allocation4 [shape = 's32[1]{0}', space=sflag, size = 0x4, scoped, tag = 'scoped memory for rnn_sum.1']
    %9 = vsyncpa [#allocation4], 0
    // Predicated region
    $region2: #{rnn_sum.1} parent=1 // pred_check
      _
    $region3: #{rnn_sum.1} parent=1 // pred_check_branch
      %11 = sbr.rel (0) target = $region5
    $region4: #{rnn_sum.1} parent=1 // pred_region
      _
    $region5: #{rnn_sum.1} parent=1 // pred_fallthru
      _
    // Predicated region
    $region6: #{rnn_sum.1} parent=1 // pred_check
      _
    $region7: #{rnn_sum.1} parent=1 // pred_check_branch
      %13 = sbr.rel (0) target = $region9
    $region8: #{rnn_sum.1} parent=1 // pred_region
      _
    $region9: #{rnn_sum.1} parent=1 // pred_fallthru
      _
    // Predicated region
    $region10: #{rnn_sum.1} parent=1 // pred_check
      _
    $region11: #{rnn_sum.1} parent=1 // pred_check_branch
      %15 = sbr.rel (0) target = $region13
    $region12: #{rnn_sum.1} parent=1 // pred_region
      _
    $region13: #{rnn_sum.1} parent=1 // pred_fallthru
      _
    // Predicated region
    $region14: #{rnn_sum.1} parent=1 // pred_check
      _
    $region15: #{rnn_sum.1} parent=1 // pred_check_branch
      %17 = sbr.rel (0) target = $region17
    $region16: #{rnn_sum.1} parent=1 // pred_region
      _
    $region17: #{rnn_sum.1} parent=1 // pred_fallthru
      _
    %v18 = vld [vmem:[%s0] sm:$0xff]
    %v19 = vld [vmem:[%s0 + $0x8] sm:$0xff]
    %v20 = vld [vmem:[%s1] sm:$0xf]
    %v21 = vld [vmem:[%s3] sm:$0x1]
    %v23 = vperm.slane %v21, 0
    %vm25 = vcmask 31744
    %v27 = vsel %vm25, %v18, 0
    %v30 = vsel %vm25, %v19, 0
    %vm32 = vcmask 1043456
    %v34 = vsel %vm32, %v20, 0
    %36 = vmatpush.msra.mxu0 0.0
    %37 = vmatpush.msra.mxu0 0.0
    %38 = vmatpush.msra.mxu0 0.0
    %39 = vmatpush.msra.mxu0 0.0
    %40 = vmatpush.msra.mxu0 0.0
    %41 = vmatpush.msra.mxu0 0.0
    %42 = vmatpush.msra.mxu0 0.0
    %43 = vmatpush.msra.mxu0 0.0
    %44 = vmatpush.msra.mxu0 0.0
    %45 = vmatpush.msra.mxu0 0.0
    %46 = vmatpush.msra.mxu0 0.0
    %47 = vmatpush.msra.mxu0 0.0
    %48 = vmatpush.msra.mxu0 0.0
    %49 = vmatpush.msra.mxu0 0.0
    %50 = vmatpush.msra.mxu0 0.0
    %51 = vmatpush.msra.mxu0 %v34
    %52 = vmatmul.f32.gmra.mxu0 %v27
    %v53 = vpop.f32.mrf.mxu0
    %v54 = vadd.f32 %v23, %v53
    %55 = vmatmul.f32.gmra.mxu0 %v30
    %v56 = vpop.f32.mrf.mxu0
    %v57 = vadd.f32 %v23, %v56
    %58 = vdwg.mxu0
    %vm59 = vcmask 39936
    %60 = vst.msk [vmem:[#allocation2] sm:$0xff] %vm59, %v54
    %61 = vst.msk [vmem:[#allocation2 + $0x8] sm:$0xff] %vm59, %v57
    %v62 = vld [vmem:[%s2] sm:$0x1f]
    %v63 = vld [vmem:[#allocation2] sm:$0x3]
    %v65 = vsel %vm59, 0.0, 0
    %vm67 = vcmask 1044480
    %v69 = vsel %vm67, %v62, 0
    %71 = vmatpush.msra.mxu0 0.0
    %72 = vmatpush.msra.mxu0 0.0
    %73 = vmatpush.msra.mxu0 0.0
    %74 = vmatpush.msra.mxu0 0.0
    %75 = vmatpush.msra.mxu0 0.0
    %76 = vmatpush.msra.mxu0 0.0
    %77 = vmatpush.msra.mxu0 0.0
    %78 = vmatpush.msra.mxu0 0.0
    %79 = vmatpush.msra.mxu0 0.0
    %80 = vmatpush.msra.mxu0 0.0
    %81 = vmatpush.msra.mxu0 0.0
    %82 = vmatpush.msra.mxu0 0.0
    %83 = vmatpush.msra.mxu0 0.0
    %84 = vmatpush.msra.mxu0 0.0
    %85 = vmatpush.msra.mxu0 0.0
    %86 = vmatpush.msra.mxu0 %v69
    %87 = vmatmul.f32.gmra.mxu0 %v65
    %v88 = vpop.f32.mrf.mxu0
    %v89 = vadd.f32 0.0, %v88
    %90 = vdwg.mxu0
    %v91 = vadd.f32 %v63, %v89
    %v92 = vld [vmem:[#allocation2 + $0x2] sm:$0x3]
    %v94 = vsel %vm59, %v91, 0
    %96 = vmatpush.msra.mxu0 0.0
    %97 = vmatpush.msra.mxu0 0.0
    %98 = vmatpush.msra.mxu0 0.0
    %99 = vmatpush.msra.mxu0 0.0
    %100 = vmatpush.msra.mxu0 0.0
    %101 = vmatpush.msra.mxu0 0.0
    %102 = vmatpush.msra.mxu0 0.0
    %103 = vmatpush.msra.mxu0 0.0
    %104 = vmatpush.msra.mxu0 0.0
    %105 = vmatpush.msra.mxu0 0.0
    %106 = vmatpush.msra.mxu0 0.0
    %107 = vmatpush.msra.mxu0 0.0
    %108 = vmatpush.msra.mxu0 0.0
    %109 = vmatpush.msra.mxu0 0.0
    %110 = vmatpush.msra.mxu0 0.0
    %111 = vmatpush.msra.mxu0 %v69
    %112 = vmatmul.f32.gmra.mxu0 %v94
    %v113 = vpop.f32.mrf.mxu0
    %v114 = vadd.f32 0.0, %v113
    %115 = vdwg.mxu0
    %v116 = vadd.f32 %v92, %v114
    %v117 = vld [vmem:[#allocation2 + $0x4] sm:$0x3]
    %v119 = vsel %vm59, %v116, 0
    %121 = vmatpush.msra.mxu0 0.0
    %122 = vmatpush.msra.mxu0 0.0
    %123 = vmatpush.msra.mxu0 0.0
    %124 = vmatpush.msra.mxu0 0.0
    %125 = vmatpush.msra.mxu0 0.0
    %126 = vmatpush.msra.mxu0 0.0
    %127 = vmatpush.msra.mxu0 0.0
    %128 = vmatpush.msra.mxu0 0.0
    %129 = vmatpush.msra.mxu0 0.0
    %130 = vmatpush.msra.mxu0 0.0
    %131 = vmatpush.msra.mxu0 0.0
    %132 = vmatpush.msra.mxu0 0.0
    %133 = vmatpush.msra.mxu0 0.0
    %134 = vmatpush.msra.mxu0 0.0
    %135 = vmatpush.msra.mxu0 0.0
    %136 = vmatpush.msra.mxu0 %v69
    %137 = vmatmul.f32.gmra.mxu0 %v119
    %v138 = vpop.f32.mrf.mxu0
    %v139 = vadd.f32 0.0, %v138
    %140 = vdwg.mxu0
    %v141 = vadd.f32 %v117, %v139
    %v142 = vld [vmem:[#allocation2 + $0x6] sm:$0x3]
    %v144 = vsel %vm59, %v141, 0
    %146 = vmatpush.msra.mxu0 0.0
    %147 = vmatpush.msra.mxu0 0.0
    %148 = vmatpush.msra.mxu0 0.0
    %149 = vmatpush.msra.mxu0 0.0
    %150 = vmatpush.msra.mxu0 0.0
    %151 = vmatpush.msra.mxu0 0.0
    %152 = vmatpush.msra.mxu0 0.0
    %153 = vmatpush.msra.mxu0 0.0
    %154 = vmatpush.msra.mxu0 0.0
    %155 = vmatpush.msra.mxu0 0.0
    %156 = vmatpush.msra.mxu0 0.0
    %157 = vmatpush.msra.mxu0 0.0
    %158 = vmatpush.msra.mxu0 0.0
    %159 = vmatpush.msra.mxu0 0.0
    %160 = vmatpush.msra.mxu0 0.0
    %161 = vmatpush.msra.mxu0 %v69
    %162 = vmatmul.f32.gmra.mxu0 %v144
    %v163 = vpop.f32.mrf.mxu0
    %v164 = vadd.f32 0.0, %v163
    %165 = vdwg.mxu0
    %v166 = vadd.f32 %v142, %v164
    %v167 = vld [vmem:[#allocation2 + $0x8] sm:$0x3]
    %v169 = vsel %vm59, %v166, 0
    %171 = vmatpush.msra.mxu0 0.0
    %172 = vmatpush.msra.mxu0 0.0
    %173 = vmatpush.msra.mxu0 0.0
    %174 = vmatpush.msra.mxu0 0.0
    %175 = vmatpush.msra.mxu0 0.0
    %176 = vmatpush.msra.mxu0 0.0
    %177 = vmatpush.msra.mxu0 0.0
    %178 = vmatpush.msra.mxu0 0.0
    %179 = vmatpush.msra.mxu0 0.0
    %180 = vmatpush.msra.mxu0 0.0
    %181 = vmatpush.msra.mxu0 0.0
    %182 = vmatpush.msra.mxu0 0.0
    %183 = vmatpush.msra.mxu0 0.0
    %184 = vmatpush.msra.mxu0 0.0
    %185 = vmatpush.msra.mxu0 0.0
    %186 = vmatpush.msra.mxu0 %v69
    %187 = vmatmul.f32.gmra.mxu0 %v169
    %v188 = vpop.f32.mrf.mxu0
    %v189 = vadd.f32 0.0, %v188
    %190 = vdwg.mxu0
    %v191 = vadd.f32 %v167, %v189
    %v192 = vld [vmem:[#allocation2 + $0xa] sm:$0x3]
    %v194 = vsel %vm59, %v191, 0
    %196 = vmatpush.msra.mxu0 0.0
    %197 = vmatpush.msra.mxu0 0.0
    %198 = vmatpush.msra.mxu0 0.0
    %199 = vmatpush.msra.mxu0 0.0
    %200 = vmatpush.msra.mxu0 0.0
    %201 = vmatpush.msra.mxu0 0.0
    %202 = vmatpush.msra.mxu0 0.0
    %203 = vmatpush.msra.mxu0 0.0
    %204 = vmatpush.msra.mxu0 0.0
    %205 = vmatpush.msra.mxu0 0.0
    %206 = vmatpush.msra.mxu0 0.0
    %207 = vmatpush.msra.mxu0 0.0
    %208 = vmatpush.msra.mxu0 0.0
    %209 = vmatpush.msra.mxu0 0.0
    %210 = vmatpush.msra.mxu0 0.0
    %211 = vmatpush.msra.mxu0 %v69
    %212 = vmatmul.f32.gmra.mxu0 %v194
    %v213 = vpop.f32.mrf.mxu0
    %v214 = vadd.f32 0.0, %v213
    %215 = vdwg.mxu0
    %v216 = vadd.f32 %v192, %v214
    %v217 = vld [vmem:[#allocation2 + $0xc] sm:$0x3]
    %v219 = vsel %vm59, %v216, 0
    %221 = vmatpush.msra.mxu0 0.0
    %222 = vmatpush.msra.mxu0 0.0
    %223 = vmatpush.msra.mxu0 0.0
    %224 = vmatpush.msra.mxu0 0.0
    %225 = vmatpush.msra.mxu0 0.0
    %226 = vmatpush.msra.mxu0 0.0
    %227 = vmatpush.msra.mxu0 0.0
    %228 = vmatpush.msra.mxu0 0.0
    %229 = vmatpush.msra.mxu0 0.0
    %230 = vmatpush.msra.mxu0 0.0
    %231 = vmatpush.msra.mxu0 0.0
    %232 = vmatpush.msra.mxu0 0.0
    %233 = vmatpush.msra.mxu0 0.0
    %234 = vmatpush.msra.mxu0 0.0
    %235 = vmatpush.msra.mxu0 0.0
    %236 = vmatpush.msra.mxu0 %v69
    %237 = vmatmul.f32.gmra.mxu0 %v219
    %v238 = vpop.f32.mrf.mxu0
    %v239 = vadd.f32 0.0, %v238
    %240 = vdwg.mxu0
    %v241 = vadd.f32 %v217, %v239
    %v242 = vld [vmem:[#allocation2 + $0xe] sm:$0x3]
    %v244 = vsel %vm59, %v241, 0
    %246 = vmatpush.msra.mxu0 0.0
    %247 = vmatpush.msra.mxu0 0.0
    %248 = vmatpush.msra.mxu0 0.0
    %249 = vmatpush.msra.mxu0 0.0
    %250 = vmatpush.msra.mxu0 0.0
    %251 = vmatpush.msra.mxu0 0.0
    %252 = vmatpush.msra.mxu0 0.0
    %253 = vmatpush.msra.mxu0 0.0
    %254 = vmatpush.msra.mxu0 0.0
    %255 = vmatpush.msra.mxu0 0.0
    %256 = vmatpush.msra.mxu0 0.0
    %257 = vmatpush.msra.mxu0 0.0
    %258 = vmatpush.msra.mxu0 0.0
    %259 = vmatpush.msra.mxu0 0.0
    %260 = vmatpush.msra.mxu0 0.0
    %261 = vmatpush.msra.mxu0 %v69
    %262 = vmatmul.f32.gmra.mxu0 %v244
    %v263 = vpop.f32.mrf.mxu0
    %v264 = vadd.f32 0.0, %v263
    %265 = vdwg.mxu0
    %v266 = vadd.f32 %v242, %v264
    %vm267 = vcmask 33792
    %v268 = vsel %vm267, %v266, 0.0
    %269 = vadd.xlane.f32.xlu0 %v268
    %v270 = vpop.xlane.xlu0 %269
    %v271 = vrot.slane %v270, 4
    %v272 = vadd.f32 %v270, %v271
    %v273 = vrot.slane %v272, 2
    %v274 = vadd.f32 %v272, %v273
    %v275 = vrot.slane %v274, 1
    %v276 = vadd.f32 %v274, %v275
    %s277 = vtos %v276
    %v278 = vstv %s277
    %279 = vst [vmem:[#allocation3] sm:$0x1] %v278
    // Predicated region
    $region18: #{rnn_sum.1} parent=1 // pred_check
      _
    $region19: #{rnn_sum.1} parent=1 // pred_check_branch
      %281 = sbr.rel (0) target = $region21
    $region20: #{rnn_sum.1} parent=1 // pred_region
      %283 = vsyncadd [#allocation4], 0
      %s285 = sshll.u32 [#allocation3], 4
      %s286 = int_to_ptr.vmem [resolvable:$true] %s285
      %s287 = sshll.u32 %s4, 4
      %s288 = int_to_ptr.hbm [resolvable:$true] %s287
      %290 = dma.vmem_to_hbm [thread:$0]  %s286, 16, %s288, [#allocation4]
    $region21: #{rnn_sum.1} parent=1 // pred_fallthru
      _
    // Predicated region
    $region22: #{rnn_sum.1} parent=1 // pred_check
      _
    $region23: #{rnn_sum.1} parent=1 // pred_check_branch
      %292 = sbr.rel (0) target = $region25
    $region24: #{rnn_sum.1} parent=1 // pred_region
      %294 = dma.done [#allocation4], 16
    $region25: #{rnn_sum.1} parent=1 // pred_fallthru
      _
    %295 = vsyncpa [#allocation4], 1

</llo_original>
